<compile_context>
chip_gen: v6e
topology: v6e:2x2x1
jax: 0.10.0
libtpu: 0.0.40
codegen_flags: <defaults>
</compile_context>

<pallas_src>
import math

import jax
import jax.numpy as jnp
from jax import lax
from jax.experimental import pallas as pl
from jax.experimental.pallas import tpu as pltpu

# ---- shapes (lane-friendly stand-in sizes) --------------------------------
B = 2          # batch
LQ = 8         # query sequence length
LT = 16        # text sequence length
H = 128        # hidden size (lane-padded stand-in for bert hidden)
VOCAB = 128    # synthetic vocab (lane-dense)
NUM_LABELS = 2
LTOT = 2 * LQ              # rows after cat([text_att, query], dim=1)
R_ALL = B * (LT + LQ)      # total encoder rows (text + query, batch-flattened)
QA_PAD = 128               # lane-padded qa_outputs width (only first 2 cols real)


# ---------------------------------------------------------------------------
# Fused forward kernel
# ---------------------------------------------------------------------------
def _make_kernel(Bn, Lt, Lq, Hd, vocab):
    r_text = Bn * Lt
    scale = 1.0 / math.sqrt(float(Hd))

    def kernel(ids_ref, emb_ref, enc_w_ref, enc_b_ref,
               wqkv_ref, bqkv_ref, qa_w_ref, qa_b_ref, logits_ref):
        # --- embedding lookup as one-hot matmul (gather-free, MXU work) -----
        ids = ids_ref[...]                                        # [R_all, 1] int32
        vocab_iota = lax.broadcasted_iota(jnp.int32, (Bn * (Lt + Lq), vocab), 1)
        one_hot = (vocab_iota == ids).astype(jnp.float32)         # [R_all, VOCAB]
        x = jnp.dot(one_hot, emb_ref[...],
                    preferred_element_type=jnp.float32)           # [R_all, H]

        # --- stand-in "BERT" encoder: tanh(x @ W + b), text+query jointly ---
        enc = jnp.tanh(
            jnp.dot(x, enc_w_ref[...], preferred_element_type=jnp.float32)
            + enc_b_ref[...])                                     # [R_all, H]

        # --- fused Q/K/V projection on all rows, slice afterwards -----------
        qkv = jnp.dot(enc, wqkv_ref[...],
                      preferred_element_type=jnp.float32) + bqkv_ref[...]  # [R_all, 3H]

        # --- cross attention: queryAtt(query, text, text), per batch --------
        hidden_rows = []
        for b in range(Bn):                                       # Bn is tiny & static
            t0 = b * Lt
            q0 = r_text + b * Lq
            q_b = qkv[q0:q0 + Lq, 0:Hd]                           # [Lq, H]
            k_b = qkv[t0:t0 + Lt, Hd:2 * Hd]                      # [Lt, H]
            v_b = qkv[t0:t0 + Lt, 2 * Hd:3 * Hd]                  # [Lt, H]
            # contract last dims -> no explicit transpose of k
            scores = lax.dot_general(
                q_b, k_b, (((1,), (1,)), ((), ())),
                preferred_element_type=jnp.float32) * scale       # [Lq, Lt]
            scores = scores - jnp.max(scores, axis=-1, keepdims=True)
            p = jnp.exp(scores)
            p = p * pl.reciprocal(jnp.sum(p, axis=-1, keepdims=True), approx=True)
            att_b = jnp.dot(p, v_b, preferred_element_type=jnp.float32)  # [Lq, H]
            query_enc_b = enc[q0:q0 + Lq, :]                      # [Lq, H]
            # torch.cat([text_att, query], dim=1) for this batch element
            hidden_rows.append(att_b)
            hidden_rows.append(query_enc_b)

        hidden = jnp.concatenate(hidden_rows, axis=0)             # [B*LTOT, H]

        # --- qa_outputs, lane-padded weight -> unmasked lane-dense store ----
        logits_ref[...] = (
            jnp.dot(hidden, qa_w_ref[...], preferred_element_type=jnp.float32)
            + qa_b_ref[...])                                      # [B*LTOT, QA_PAD]

    return kernel


def fused_forward(ids_all, emb, enc_w, enc_b, wqkv, bqkv, qa_w_pad, qa_b_pad):
    kernel = _make_kernel(B, LT, LQ, H, VOCAB)
    return pl.pallas_call(
        kernel,
        out_shape=jax.ShapeDtypeStruct((B * LTOT, QA_PAD), jnp.float32),
        grid=(1,),  # single grid step; whole model fits comfortably in VMEM
        in_specs=[
            pl.BlockSpec((R_ALL, 1), lambda i: (0, 0)),       # token ids
            pl.BlockSpec((VOCAB, H), lambda i: (0, 0)),       # embedding table
            pl.BlockSpec((H, H), lambda i: (0, 0)),           # enc_w
            pl.BlockSpec((1, H), lambda i: (0, 0)),           # enc_b
            pl.BlockSpec((H, 3 * H), lambda i: (0, 0)),       # fused QKV weight
            pl.BlockSpec((1, 3 * H), lambda i: (0, 0)),       # fused QKV bias
            pl.BlockSpec((H, QA_PAD), lambda i: (0, 0)),      # qa_w (lane-padded)
            pl.BlockSpec((1, QA_PAD), lambda i: (0, 0)),      # qa_b (lane-padded)
        ],
        out_specs=pl.BlockSpec((B * LTOT, QA_PAD), lambda i: (0, 0)),
        compiler_params=pltpu.CompilerParams(
            dimension_semantics=("arbitrary",)),
    )(ids_all, emb, enc_w, enc_b, wqkv, bqkv, qa_w_pad, qa_b_pad)


# ---------------------------------------------------------------------------
# Plain-JAX glue: loss (tiny), argmax predictions
# ---------------------------------------------------------------------------
def _ce_loss_ignore(logits, labels, ignore_index):
    # CrossEntropyLoss(ignore_index=ignore_index), reduction='mean'
    logp = jax.nn.log_softmax(logits, axis=-1)                    # [B, C]
    valid = labels != ignore_index
    safe = jnp.where(valid, labels, 0)
    nll = -jnp.take_along_axis(logp, safe[:, None], axis=-1)[:, 0]
    nll = jnp.where(valid, nll, 0.0)
    denom = jnp.maximum(jnp.sum(valid.astype(jnp.float32)), 1.0)
    return jnp.sum(nll) / denom


def ore_forward(params, text_ids, query_ids, start_ids, end_ids):
    # batch-flattened token ids: [text rows ; query rows], shape [R_ALL, 1]
    ids_all = jnp.concatenate(
        [text_ids.reshape(-1), query_ids.reshape(-1)]).astype(jnp.int32)
    ids_all = ids_all.reshape(R_ALL, 1)

    logits_pad = fused_forward(
        ids_all,
        params["embedding"], params["enc_w"], params["enc_b"],
        params["att_wqkv"], params["att_bqkv"],
        params["qa_w_pad"], params["qa_b_pad"])                   # [B*LTOT, QA_PAD]

    logits = logits_pad.reshape(B, LTOT, QA_PAD)[..., :NUM_LABELS]  # [B, LTOT, 2]
    start_logits = logits[..., 0]                                 # [B, LTOT]
    end_logits = logits[..., 1]                                   # [B, LTOT]

    ignored_index = start_logits.shape[1]
    start_ids = jnp.clip(start_ids.reshape(-1), 0, ignored_index)
    end_ids = jnp.clip(end_ids.reshape(-1), 0, ignored_index)

    start_loss = _ce_loss_ignore(start_logits, start_ids, ignored_index)
    end_loss = _ce_loss_ignore(end_logits, end_ids, ignored_index)
    total_loss = (start_loss + end_loss) / 2.0

    # argmax(softmax(x)) == argmax(x): the softmax is dropped (same result).
    pred_s = jnp.argmax(start_logits, axis=-1)
    end_s = jnp.argmax(end_logits, axis=-1)
    return total_loss, pred_s, end_s


# ---------------------------------------------------------------------------
def init_params(key):
    ks = jax.random.split(key, 10)
    s = 0.02
    # fused QKV weight/bias for BasicAttention (one [H, 3H] matmul in-kernel)
    att_wqkv = s * jax.random.normal(ks[2], (H, 3 * H), jnp.float32)
    att_bqkv = jnp.zeros((1, 3 * H), jnp.float32)
    # qa_outputs weight lane-padded to 128 columns (only first NUM_LABELS real)
    qa_w = s * jax.random.normal(ks[5], (H, NUM_LABELS), jnp.float32)
    qa_w_pad = jnp.zeros((H, QA_PAD), jnp.float32).at[:, :NUM_LABELS].set(qa_w)
    qa_b_pad = jnp.zeros((1, QA_PAD), jnp.float32)
    return {
        "embedding": s * jax.random.normal(ks[0], (VOCAB, H), jnp.float32),
        "enc_w": s * jax.random.normal(ks[1], (H, H), jnp.float32),
        "enc_b": jnp.zeros((1, H), jnp.float32),
        "att_wqkv": att_wqkv,
        "att_bqkv": att_bqkv,
        "qa_w_pad": qa_w_pad,
        "qa_b_pad": qa_b_pad,
    }


if __name__ == "__main__":
    key = jax.random.PRNGKey(0)
    kp, kt, kq, ksi, kei = jax.random.split(key, 5)

    params = init_params(kp)
    text_ids = jax.random.randint(kt, (B, LT), 0, VOCAB, dtype=jnp.int32)
    query_ids = jax.random.randint(kq, (B, LQ), 0, VOCAB, dtype=jnp.int32)
    start_ids = jax.random.randint(ksi, (B,), 0, LTOT, dtype=jnp.int32)
    end_ids = jax.random.randint(kei, (B,), 0, LTOT, dtype=jnp.int32)

    total_loss, pred_s, end_s = jax.jit(ore_forward)(
        params, text_ids, query_ids, start_ids, end_ids)
    jax.block_until_ready((total_loss, pred_s, end_s))

    assert total_loss.shape == ()
    assert pred_s.shape == (B,) and end_s.shape == (B,)
    print("KERNEL_OK")
</pallas_src>

<mosaic_0001>
module attributes {stable_mosaic.version = 11 : i64} {
  func.func @kernel(%arg0: i32, %arg1: memref<48x1xi32, #tpu.memory_space<vmem>>, %arg2: memref<128x128xf32, #tpu.memory_space<vmem>>, %arg3: memref<128x128xf32, #tpu.memory_space<vmem>>, %arg4: memref<1x128xf32, #tpu.memory_space<vmem>>, %arg5: memref<128x384xf32, #tpu.memory_space<vmem>>, %arg6: memref<1x384xf32, #tpu.memory_space<vmem>>, %arg7: memref<128x128xf32, #tpu.memory_space<vmem>>, %arg8: memref<1x128xf32, #tpu.memory_space<vmem>>, %arg9: memref<32x128xf32, #tpu.memory_space<vmem>>) attributes {dimension_semantics = [#tpu.dimension_semantics<arbitrary>], iteration_bounds = array<i64: 1>, scalar_prefetch = 0 : i64, scratch_operands = 0 : i64, tpu.core_type = #tpu.core_type<tc>, window_params = [{pipeline_mode = #tpu.pipeline_mode<synchronous>, transform_indices = @transform_0, window_bounds = array<i64: 48, 1>}, {pipeline_mode = #tpu.pipeline_mode<synchronous>, transform_indices = @transform_1, window_bounds = array<i64: 128, 128>}, {pipeline_mode = #tpu.pipeline_mode<synchronous>, transform_indices = @transform_2, window_bounds = array<i64: 128, 128>}, {pipeline_mode = #tpu.pipeline_mode<synchronous>, transform_indices = @transform_3, window_bounds = array<i64: 1, 128>}, {pipeline_mode = #tpu.pipeline_mode<synchronous>, transform_indices = @transform_4, window_bounds = array<i64: 128, 384>}, {pipeline_mode = #tpu.pipeline_mode<synchronous>, transform_indices = @transform_5, window_bounds = array<i64: 1, 384>}, {pipeline_mode = #tpu.pipeline_mode<synchronous>, transform_indices = @transform_6, window_bounds = array<i64: 128, 128>}, {pipeline_mode = #tpu.pipeline_mode<synchronous>, transform_indices = @transform_7, window_bounds = array<i64: 1, 128>}, {pipeline_mode = #tpu.pipeline_mode<synchronous>, transform_indices = @transform_8, window_bounds = array<i64: 32, 128>}]} {
    %c0 = arith.constant 0 : index
    %c0_0 = arith.constant 0 : index
    %0 = vector.load %arg1[%c0, %c0_0] : memref<48x1xi32, #tpu.memory_space<vmem>>, vector<48x1xi32>
    %1 = tpu.iota {dimensions = array<i32: 1>} : vector<48x128xi32>
    %2 = vector.broadcast %0 : vector<48x1xi32> to vector<48x128xi32>
    %3 = arith.cmpi eq, %1, %2 : vector<48x128xi32>
    %4 = arith.extui %3 : vector<48x128xi1> to vector<48x128xi32>
    %5 = arith.sitofp %4 : vector<48x128xi32> to vector<48x128xf32>
    %c0_1 = arith.constant 0 : index
    %c0_2 = arith.constant 0 : index
    %6 = vector.load %arg2[%c0_1, %c0_2] : memref<128x128xf32, #tpu.memory_space<vmem>>, vector<128x128xf32>
    %cst = arith.constant dense<0.000000e+00> : vector<48x128xf32>
    %7 = tpu.matmul %5, %6, %cst {dimension_numbers = #tpu.dot_dimension_numbers<[1], [0], [0], [1], [0, 0, 1, 1], [], []>} : vector<48x128xf32>, vector<128x128xf32>, vector<48x128xf32> -> vector<48x128xf32>
    %c0_3 = arith.constant 0 : index
    %c0_4 = arith.constant 0 : index
    %8 = vector.load %arg3[%c0_3, %c0_4] : memref<128x128xf32, #tpu.memory_space<vmem>>, vector<128x128xf32>
    %cst_5 = arith.constant dense<0.000000e+00> : vector<48x128xf32>
    %9 = tpu.matmul %7, %8, %cst_5 {dimension_numbers = #tpu.dot_dimension_numbers<[1], [0], [0], [1], [0, 0, 1, 1], [], []>} : vector<48x128xf32>, vector<128x128xf32>, vector<48x128xf32> -> vector<48x128xf32>
    %c0_6 = arith.constant 0 : index
    %c0_7 = arith.constant 0 : index
    %10 = vector.load %arg4[%c0_6, %c0_7] : memref<1x128xf32, #tpu.memory_space<vmem>>, vector<1x128xf32>
    %11 = vector.broadcast %10 : vector<1x128xf32> to vector<48x128xf32>
    %12 = arith.addf %9, %11 : vector<48x128xf32>
    %13 = math.tanh %12 : vector<48x128xf32>
    %c0_8 = arith.constant 0 : index
    %c0_9 = arith.constant 0 : index
    %14 = vector.load %arg5[%c0_8, %c0_9] : memref<128x384xf32, #tpu.memory_space<vmem>>, vector<128x384xf32>
    %cst_10 = arith.constant dense<0.000000e+00> : vector<48x384xf32>
    %15 = tpu.matmul %13, %14, %cst_10 {dimension_numbers = #tpu.dot_dimension_numbers<[1], [0], [0], [1], [0, 0, 1, 1], [], []>} : vector<48x128xf32>, vector<128x384xf32>, vector<48x384xf32> -> vector<48x384xf32>
    %c0_11 = arith.constant 0 : index
    %c0_12 = arith.constant 0 : index
    %16 = vector.load %arg6[%c0_11, %c0_12] : memref<1x384xf32, #tpu.memory_space<vmem>>, vector<1x384xf32>
    %17 = vector.broadcast %16 : vector<1x384xf32> to vector<48x384xf32>
    %18 = arith.addf %15, %17 : vector<48x384xf32>
    %19 = vector.extract_strided_slice %18 {offsets = [32, 0], sizes = [8, 128], strides = [1, 1]} : vector<48x384xf32> to vector<8x128xf32>
    %20 = vector.extract_strided_slice %18 {offsets = [0, 128], sizes = [16, 128], strides = [1, 1]} : vector<48x384xf32> to vector<16x128xf32>
    %21 = vector.extract_strided_slice %18 {offsets = [0, 256], sizes = [16, 128], strides = [1, 1]} : vector<48x384xf32> to vector<16x128xf32>
    %cst_13 = arith.constant dense<0.000000e+00> : vector<8x16xf32>
    %22 = tpu.matmul %19, %20, %cst_13 {dimension_numbers = #tpu.dot_dimension_numbers<[1], [1], [0], [0], [0, 0, 1, 0], [], []>} : vector<8x128xf32>, vector<16x128xf32>, vector<8x16xf32> -> vector<8x16xf32>
    %cst_14 = arith.constant 0.0883883461 : f32
    %23 = vector.broadcast %cst_14 : f32 to vector<8x16xf32>
    %24 = arith.mulf %22, %23 : vector<8x16xf32>
    %cst_15 = arith.constant dense<0xFF800000> : vector<8xf32>
    %25 = vector.multi_reduction <maximumf>, %24, %cst_15 [1] : vector<8x16xf32> to vector<8xf32>
    %26 = vector.shape_cast %25 : vector<8xf32> to vector<8x1xf32>
    %27 = vector.broadcast %26 : vector<8x1xf32> to vector<8x16xf32>
    %28 = arith.subf %24, %27 : vector<8x16xf32>
    %29 = math.exp %28 : vector<8x16xf32>
    %cst_16 = arith.constant dense<0.000000e+00> : vector<8xf32>
    %30 = vector.multi_reduction <add>, %29, %cst_16 [1] : vector<8x16xf32> to vector<8xf32>
    %31 = vector.shape_cast %30 : vector<8xf32> to vector<8x1xf32>
    %32 = tpu.reciprocal %31 {approx = true} : vector<8x1xf32> -> vector<8x1xf32>
    %33 = vector.broadcast %32 : vector<8x1xf32> to vector<8x16xf32>
    %34 = arith.mulf %29, %33 : vector<8x16xf32>
    %cst_17 = arith.constant dense<0.000000e+00> : vector<8x128xf32>
    %35 = tpu.matmul %34, %21, %cst_17 {dimension_numbers = #tpu.dot_dimension_numbers<[1], [0], [0], [1], [0, 0, 1, 1], [], []>} : vector<8x16xf32>, vector<16x128xf32>, vector<8x128xf32> -> vector<8x128xf32>
    %36 = vector.extract_strided_slice %13 {offsets = [32, 0], sizes = [8, 128], strides = [1, 1]} : vector<48x128xf32> to vector<8x128xf32>
    %37 = vector.extract_strided_slice %18 {offsets = [40, 0], sizes = [8, 128], strides = [1, 1]} : vector<48x384xf32> to vector<8x128xf32>
    %38 = vector.extract_strided_slice %18 {offsets = [16, 128], sizes = [16, 128], strides = [1, 1]} : vector<48x384xf32> to vector<16x128xf32>
    %39 = vector.extract_strided_slice %18 {offsets = [16, 256], sizes = [16, 128], strides = [1, 1]} : vector<48x384xf32> to vector<16x128xf32>
    %cst_18 = arith.constant dense<0.000000e+00> : vector<8x16xf32>
    %40 = tpu.matmul %37, %38, %cst_18 {dimension_numbers = #tpu.dot_dimension_numbers<[1], [1], [0], [0], [0, 0, 1, 0], [], []>} : vector<8x128xf32>, vector<16x128xf32>, vector<8x16xf32> -> vector<8x16xf32>
    %cst_19 = arith.constant 0.0883883461 : f32
    %41 = vector.broadcast %cst_19 : f32 to vector<8x16xf32>
    %42 = arith.mulf %40, %41 : vector<8x16xf32>
    %cst_20 = arith.constant dense<0xFF800000> : vector<8xf32>
    %43 = vector.multi_reduction <maximumf>, %42, %cst_20 [1] : vector<8x16xf32> to vector<8xf32>
    %44 = vector.shape_cast %43 : vector<8xf32> to vector<8x1xf32>
    %45 = vector.broadcast %44 : vector<8x1xf32> to vector<8x16xf32>
    %46 = arith.subf %42, %45 : vector<8x16xf32>
    %47 = math.exp %46 : vector<8x16xf32>
    %cst_21 = arith.constant dense<0.000000e+00> : vector<8xf32>
    %48 = vector.multi_reduction <add>, %47, %cst_21 [1] : vector<8x16xf32> to vector<8xf32>
    %49 = vector.shape_cast %48 : vector<8xf32> to vector<8x1xf32>
    %50 = tpu.reciprocal %49 {approx = true} : vector<8x1xf32> -> vector<8x1xf32>
    %51 = vector.broadcast %50 : vector<8x1xf32> to vector<8x16xf32>
    %52 = arith.mulf %47, %51 : vector<8x16xf32>
    %cst_22 = arith.constant dense<0.000000e+00> : vector<8x128xf32>
    %53 = tpu.matmul %52, %39, %cst_22 {dimension_numbers = #tpu.dot_dimension_numbers<[1], [0], [0], [1], [0, 0, 1, 1], [], []>} : vector<8x16xf32>, vector<16x128xf32>, vector<8x128xf32> -> vector<8x128xf32>
    %54 = vector.extract_strided_slice %13 {offsets = [40, 0], sizes = [8, 128], strides = [1, 1]} : vector<48x128xf32> to vector<8x128xf32>
    %55 = tpu.concatenate %35, %36, %53, %54 in 0 : vector<8x128xf32>, vector<8x128xf32>, vector<8x128xf32>, vector<8x128xf32> -> vector<32x128xf32>
    %c0_23 = arith.constant 0 : index
    %c0_24 = arith.constant 0 : index
    %56 = vector.load %arg7[%c0_23, %c0_24] : memref<128x128xf32, #tpu.memory_space<vmem>>, vector<128x128xf32>
    %cst_25 = arith.constant dense<0.000000e+00> : vector<32x128xf32>
    %57 = tpu.matmul %55, %56, %cst_25 {dimension_numbers = #tpu.dot_dimension_numbers<[1], [0], [0], [1], [0, 0, 1, 1], [], []>} : vector<32x128xf32>, vector<128x128xf32>, vector<32x128xf32> -> vector<32x128xf32>
    %c0_26 = arith.constant 0 : index
    %c0_27 = arith.constant 0 : index
    %58 = vector.load %arg8[%c0_26, %c0_27] : memref<1x128xf32, #tpu.memory_space<vmem>>, vector<1x128xf32>
    %59 = vector.broadcast %58 : vector<1x128xf32> to vector<32x128xf32>
    %60 = arith.addf %57, %59 : vector<32x128xf32>
    %c0_28 = arith.constant 0 : index
    %c0_29 = arith.constant 0 : index
    %61 = vector.load %arg9[%c0_28, %c0_29] : memref<32x128xf32, #tpu.memory_space<vmem>>, vector<32x128xf32>
    tpu.vector_store %arg9[%c0_28, %c0_29], %60 {strides = array<i32>} : memref<32x128xf32, #tpu.memory_space<vmem>>, vector<32x128xf32>,
    return
  }
  func.func @transform_0(%arg0: i32) -> (i32, i32) {
    %c0_i32 = arith.constant 0 : i32
    %c0_i32_0 = arith.constant 0 : i32
    %c0_i32_1 = arith.constant 0 : i32
    return %c0_i32, %c0_i32_0 : i32, i32
  }
  func.func @transform_1(%arg0: i32) -> (i32, i32) {
    %c0_i32 = arith.constant 0 : i32
    %c0_i32_0 = arith.constant 0 : i32
    %c0_i32_1 = arith.constant 0 : i32
    return %c0_i32, %c0_i32_0 : i32, i32
  }
  func.func @transform_2(%arg0: i32) -> (i32, i32) {
    %c0_i32 = arith.constant 0 : i32
    %c0_i32_0 = arith.constant 0 : i32
    %c0_i32_1 = arith.constant 0 : i32
    return %c0_i32, %c0_i32_0 : i32, i32
  }
  func.func @transform_3(%arg0: i32) -> (i32, i32) {
    %c0_i32 = arith.constant 0 : i32
    %c0_i32_0 = arith.constant 0 : i32
    %c0_i32_1 = arith.constant 0 : i32
    return %c0_i32, %c0_i32_0 : i32, i32
  }
  func.func @transform_4(%arg0: i32) -> (i32, i32) {
    %c0_i32 = arith.constant 0 : i32
    %c0_i32_0 = arith.constant 0 : i32
    %c0_i32_1 = arith.constant 0 : i32
    return %c0_i32, %c0_i32_0 : i32, i32
  }
  func.func @transform_5(%arg0: i32) -> (i32, i32) {
    %c0_i32 = arith.constant 0 : i32
    %c0_i32_0 = arith.constant 0 : i32
    %c0_i32_1 = arith.constant 0 : i32
    return %c0_i32, %c0_i32_0 : i32, i32
  }
  func.func @transform_6(%arg0: i32) -> (i32, i32) {
    %c0_i32 = arith.constant 0 : i32
    %c0_i32_0 = arith.constant 0 : i32
    %c0_i32_1 = arith.constant 0 : i32
    return %c0_i32, %c0_i32_0 : i32, i32
  }
  func.func @transform_7(%arg0: i32) -> (i32, i32) {
    %c0_i32 = arith.constant 0 : i32
    %c0_i32_0 = arith.constant 0 : i32
    %c0_i32_1 = arith.constant 0 : i32
    return %c0_i32, %c0_i32_0 : i32, i32
  }
  func.func @transform_8(%arg0: i32) -> (i32, i32) {
    %c0_i32 = arith.constant 0 : i32
    %c0_i32_0 = arith.constant 0 : i32
    %c0_i32_1 = arith.constant 0 : i32
    return %c0_i32, %c0_i32_0 : i32, i32
  }
}

</mosaic_0001>

<llo_original>
// kernel: ore_forward.1
$region0: #{ore_forward.1}
  #allocation0 [shape = 'u32[]', space=smem, size = 0x4, offset = 0x4, fixed_abs, tag = 'smem constant byte address 0x4 - core index']
  #allocation1 [shape = 'u32[144,128]{1,0:T(1,128)}', space=vmem, size = 0x12000, scoped, tag = 'internal scratch']
  %s0 = inlined_call_operand.vmem [shape: s32[48,1], index: 0, kind: input, shape index: {}]
  %s1 = inlined_call_operand.hbm [shape: f32[128,128], index: 1, kind: input, shape index: {}]
  %s2 = inlined_call_operand.hbm [shape: f32[128,128], index: 2, kind: input, shape index: {}]
  %s3 = inlined_call_operand.vmem [shape: f32[1,128], index: 3, kind: input, shape index: {}]
  %s4 = inlined_call_operand.hbm [shape: f32[128,384], index: 4, kind: input, shape index: {}]
  %s5 = inlined_call_operand.vmem [shape: f32[1,384], index: 5, kind: input, shape index: {}]
  %s6 = inlined_call_operand.hbm [shape: f32[128,128], index: 6, kind: input, shape index: {}]
  %s7 = inlined_call_operand.vmem [shape: f32[1,128], index: 7, kind: input, shape index: {}]
  %s8 = inlined_call_operand.vmem [shape: f32[32,128], index: 8, kind: output, shape index: {}]
  %s9 = sld [smem:[#allocation0]]
  $region58: #{ore_forward.1} parent=0
    _
  %s11 = ssub.s32 1, %s9
  %s12 = scalar_select 0, %s11, %s9
  $region1: #{ore_forward.1} parent=0
    #allocation2 [shape = 'u8[65536]{0}', space=vmem, size = 0x10000, scoped, tag = 'input window, operand 1, single buffered']
    #allocation3 [shape = 's32[1]{0}', space=sflag, size = 0x4, scoped, tag = 'scoped memory for ore_forward.1']
    #allocation4 [shape = 'u8[65536]{0}', space=vmem, size = 0x10000, scoped, tag = 'input window, operand 2, single buffered']
    #allocation5 [shape = 's32[1]{0}', space=sflag, size = 0x4, scoped, tag = 'scoped memory for ore_forward.1']
    #allocation6 [shape = 'u8[196608]{0}', space=vmem, size = 0x30000, scoped, tag = 'input window, operand 4, single buffered']
    #allocation7 [shape = 'u8[65536]{0}', space=vmem, size = 0x10000, scoped, tag = 'input window, operand 6, single buffered']
    #allocation8 [shape = 's32[1]{0}', space=sflag, size = 0x4, scoped, tag = 'scoped memory for ore_forward.1']
    %13 = vsyncpa [#allocation3], 0
    %14 = vsyncpa [#allocation5], 0
    %15 = vsyncpa [#allocation8], 0
    // Predicated region
    $region2: #{ore_forward.1} parent=1 // pred_check
      _
    $region3: #{ore_forward.1} parent=1 // pred_check_branch
      %17 = sbr.rel (0) target = $region5
    $region4: #{ore_forward.1} parent=1 // pred_region
      _
    $region5: #{ore_forward.1} parent=1 // pred_fallthru
      _
    // Predicated region
    $region6: #{ore_forward.1} parent=1 // pred_check
      _
    $region7: #{ore_forward.1} parent=1 // pred_check_branch
      %19 = sbr.rel (0) target = $region9
    $region8: #{ore_forward.1} parent=1 // pred_region
      %s21 = ssub.s32 2048, 2048
      %22 = vsyncadd [#allocation3], %s21
      %s23 = sshll.u32 [#allocation2], 4
      %s24 = int_to_ptr.vmem [resolvable:$true] %s23
      %29 = dma.hbm_to_vmem [thread:$0]  %s1, 2048, %s24, [#allocation3], 128, 128, 8
    $region9: #{ore_forward.1} parent=1 // pred_fallthru
      _
    // Predicated region
    $region10: #{ore_forward.1} parent=1 // pred_check
      _
    $region11: #{ore_forward.1} parent=1 // pred_check_branch
      %31 = sbr.rel (0) target = $region13
    $region12: #{ore_forward.1} parent=1 // pred_region
      %s33 = ssub.s32 2048, 2048
      %34 = vsyncadd [#allocation5], %s33
      %s35 = sshll.u32 [#allocation4], 4
      %s36 = int_to_ptr.vmem [resolvable:$true] %s35
      %41 = dma.hbm_to_vmem [thread:$0]  %s2, 2048, %s36, [#allocation5], 128, 128, 8
    $region13: #{ore_forward.1} parent=1 // pred_fallthru
      _
    // Predicated region
    $region14: #{ore_forward.1} parent=1 // pred_check
      _
    $region15: #{ore_forward.1} parent=1 // pred_check_branch
      %43 = sbr.rel (0) target = $region17
    $region16: #{ore_forward.1} parent=1 // pred_region
      _
    $region17: #{ore_forward.1} parent=1 // pred_fallthru
      _
    // Predicated region
    $region18: #{ore_forward.1} parent=1 // pred_check
      _
    $region19: #{ore_forward.1} parent=1 // pred_check_branch
      %45 = sbr.rel (0) target = $region21
    $region20: #{ore_forward.1} parent=1 // pred_region
      %s47 = ssub.s32 6144, 6144
      %48 = vsyncadd [#allocation5], %s47
      %s49 = sshll.u32 [#allocation6], 4
      %s50 = int_to_ptr.vmem [resolvable:$true] %s49
      %55 = dma.hbm_to_vmem [thread:$0]  %s4, 6144, %s50, [#allocation5], 384, 384, 24
    $region21: #{ore_forward.1} parent=1 // pred_fallthru
      _
    // Predicated region
    $region22: #{ore_forward.1} parent=1 // pred_check
      _
    $region23: #{ore_forward.1} parent=1 // pred_check_branch
      %57 = sbr.rel (0) target = $region25
    $region24: #{ore_forward.1} parent=1 // pred_region
      _
    $region25: #{ore_forward.1} parent=1 // pred_fallthru
      _
    // Predicated region
    $region26: #{ore_forward.1} parent=1 // pred_check
      _
    $region27: #{ore_forward.1} parent=1 // pred_check_branch
      %59 = sbr.rel (0) target = $region29
    $region28: #{ore_forward.1} parent=1 // pred_region
      %s61 = ssub.s32 2048, 2048
      %62 = vsyncadd [#allocation8], %s61
      %s63 = sshll.u32 [#allocation7], 4
      %s64 = int_to_ptr.vmem [resolvable:$true] %s63
      %69 = dma.hbm_to_vmem [thread:$0]  %s6, 2048, %s64, [#allocation8], 128, 128, 8
    $region29: #{ore_forward.1} parent=1 // pred_fallthru
      _
    // Predicated region
    $region30: #{ore_forward.1} parent=1 // pred_check
      _
    $region31: #{ore_forward.1} parent=1 // pred_check_branch
      %71 = sbr.rel (0) target = $region33
    $region32: #{ore_forward.1} parent=1 // pred_region
      _
    $region33: #{ore_forward.1} parent=1 // pred_fallthru
      _
    // Predicated region
    $region34: #{ore_forward.1} parent=1 // pred_check
      _
    $region35: #{ore_forward.1} parent=1 // pred_check_branch
      %73 = sbr.rel (0) target = $region37
    $region36: #{ore_forward.1} parent=1 // pred_region
      %74 = dma.done [#allocation3], 2048
    $region37: #{ore_forward.1} parent=1 // pred_fallthru
      _
    // Predicated region
    $region38: #{ore_forward.1} parent=1 // pred_check
      _
    $region39: #{ore_forward.1} parent=1 // pred_check_branch
      %76 = sbr.rel (0) target = $region41
    $region40: #{ore_forward.1} parent=1 // pred_region
      %77 = dma.done [#allocation5], 2048
    $region41: #{ore_forward.1} parent=1 // pred_fallthru
      _
    // Predicated region
    $region42: #{ore_forward.1} parent=1 // pred_check
      _
    $region43: #{ore_forward.1} parent=1 // pred_check_branch
      %79 = sbr.rel (0) target = $region45
    $region44: #{ore_forward.1} parent=1 // pred_region
      %80 = dma.done [#allocation5], 6144
    $region45: #{ore_forward.1} parent=1 // pred_fallthru
      _
    // Predicated region
    $region46: #{ore_forward.1} parent=1 // pred_check
      _
    $region47: #{ore_forward.1} parent=1 // pred_check_branch
      %82 = sbr.rel (0) target = $region49
    $region48: #{ore_forward.1} parent=1 // pred_region
      %83 = dma.done [#allocation8], 2048
    $region49: #{ore_forward.1} parent=1 // pred_fallthru
      _
    %v84 = vld [vmem:[%s0] sm:$0xff]
    %v85 = vld [vmem:[%s0 + $0x8] sm:$0xff]
    %v86 = vld [vmem:[%s0 + $0x10] sm:$0xff]
    %v87 = vld [vmem:[%s0 + $0x18] sm:$0xff]
    %v88 = vld [vmem:[%s0 + $0x20] sm:$0xff]
    %v89 = vld [vmem:[%s0 + $0x28] sm:$0xff]
    %v90 = vlaneseq
    %v91 = vand.u32 %v90, 127
    %92 = vset.pattern.permute.xlu0 0
    %93 = vperm.xlu0 %92, %v84
    %v94 = vpop.permute.xlu0 %93
    %95 = vset.pattern.permute.xlu0 0
    %96 = vperm.xlu0 %95, %v85
    %v97 = vpop.permute.xlu0 %96
    %98 = vset.pattern.permute.xlu0 0
    %99 = vperm.xlu0 %98, %v86
    %v100 = vpop.permute.xlu0 %99
    %101 = vset.pattern.permute.xlu0 0
    %102 = vperm.xlu0 %101, %v87
    %v103 = vpop.permute.xlu0 %102
    %104 = vset.pattern.permute.xlu0 0
    %105 = vperm.xlu0 %104, %v88
    %v106 = vpop.permute.xlu0 %105
    %107 = vset.pattern.permute.xlu0 0
    %108 = vperm.xlu0 %107, %v89
    %v109 = vpop.permute.xlu0 %108
    %vm110 = vcmp.eq.s32.totalorder %v91, %v94
    %vm111 = vcmp.eq.s32.totalorder %v91, %v97
    %vm112 = vcmp.eq.s32.totalorder %v91, %v100
    %vm113 = vcmp.eq.s32.totalorder %v91, %v103
    %vm114 = vcmp.eq.s32.totalorder %v91, %v106
    %vm115 = vcmp.eq.s32.totalorder %v91, %v109
    %v116 = vsel %vm110, 1, 0
    %v117 = vsel %vm111, 1, 0
    %v118 = vsel %vm112, 1, 0
    %v119 = vsel %vm113, 1, 0
    %v120 = vsel %vm114, 1, 0
    %v121 = vsel %vm115, 1, 0
    %v122 = vcvt.s32.f32 %v116
    %v123 = vcvt.s32.f32 %v117
    %v124 = vcvt.s32.f32 %v118
    %v125 = vcvt.s32.f32 %v119
    %v126 = vcvt.s32.f32 %v120
    %v127 = vcvt.s32.f32 %v121
    %v128 = vld [vmem:[#allocation2] sm:$0xff]
    %v129 = vld [vmem:[#allocation2 + $0x8] sm:$0xff]
    %v130 = vld [vmem:[#allocation2 + $0x10] sm:$0xff]
    %v131 = vld [vmem:[#allocation2 + $0x18] sm:$0xff]
    %v132 = vld [vmem:[#allocation2 + $0x20] sm:$0xff]
    %v133 = vld [vmem:[#allocation2 + $0x28] sm:$0xff]
    %v134 = vld [vmem:[#allocation2 + $0x30] sm:$0xff]
    %v135 = vld [vmem:[#allocation2 + $0x38] sm:$0xff]
    %v136 = vld [vmem:[#allocation2 + $0x40] sm:$0xff]
    %v137 = vld [vmem:[#allocation2 + $0x48] sm:$0xff]
    %v138 = vld [vmem:[#allocation2 + $0x50] sm:$0xff]
    %v139 = vld [vmem:[#allocation2 + $0x58] sm:$0xff]
    %v140 = vld [vmem:[#allocation2 + $0x60] sm:$0xff]
    %v141 = vld [vmem:[#allocation2 + $0x68] sm:$0xff]
    %v142 = vld [vmem:[#allocation2 + $0x70] sm:$0xff]
    %v143 = vld [vmem:[#allocation2 + $0x78] sm:$0xff]
    %144 = vmatprep.subr.mxu0 0.0
    %145 = vmatpush1.msra.mxu0 %v143
    %146 = vmatprep.subr.mxu0 0.0
    %147 = vmatpush1.msra.mxu0 %v142
    %148 = vmatprep.subr.mxu0 0.0
    %149 = vmatpush1.msra.mxu0 %v141
    %150 = vmatprep.subr.mxu0 0.0
    %151 = vmatpush1.msra.mxu0 %v140
    %152 = vmatprep.subr.mxu0 0.0
    %153 = vmatpush1.msra.mxu0 %v139
    %154 = vmatprep.subr.mxu0 0.0
    %155 = vmatpush1.msra.mxu0 %v138
    %156 = vmatprep.subr.mxu0 0.0
    %157 = vmatpush1.msra.mxu0 %v137
    %158 = vmatprep.subr.mxu0 0.0
    %159 = vmatpush1.msra.mxu0 %v136
    %160 = vmatprep.subr.mxu0 0.0
    %161 = vmatpush1.msra.mxu0 %v135
    %162 = vmatprep.subr.mxu0 0.0
    %163 = vmatpush1.msra.mxu0 %v134
    %164 = vmatprep.subr.mxu0 0.0
    %165 = vmatpush1.msra.mxu0 %v133
    %166 = vmatprep.subr.mxu0 0.0
    %167 = vmatpush1.msra.mxu0 %v132
    %168 = vmatprep.subr.mxu0 0.0
    %169 = vmatpush1.msra.mxu0 %v131
    %170 = vmatprep.subr.mxu0 0.0
    %171 = vmatpush1.msra.mxu0 %v130
    %172 = vmatprep.subr.mxu0 0.0
    %173 = vmatpush1.msra.mxu0 %v129
    %174 = vmatprep.subr.mxu0 0.0
    %175 = vmatpush1.msra.mxu0 %v128
    %176 = vmatprep.subr.mxu0 0.0
    %177 = vmatpush2.msra.mxu0 0.0
    %178 = vmatprep.subr.mxu0 0.0
    %179 = vmatpush2.msra.mxu0 0.0
    %180 = vmatprep.subr.mxu0 0.0
    %181 = vmatpush2.msra.mxu0 0.0
    %182 = vmatprep.subr.mxu0 0.0
    %183 = vmatpush2.msra.mxu0 0.0
    %184 = vmatprep.subr.mxu0 0.0
    %185 = vmatpush2.msra.mxu0 0.0
    %186 = vmatprep.subr.mxu0 0.0
    %187 = vmatpush2.msra.mxu0 0.0
    %188 = vmatprep.subr.mxu0 0.0
    %189 = vmatpush2.msra.mxu0 0.0
    %190 = vmatprep.subr.mxu0 0.0
    %191 = vmatpush2.msra.mxu0 0.0
    %192 = vmatprep.subr.mxu0 0.0
    %193 = vmatpush2.msra.mxu0 0.0
    %194 = vmatprep.subr.mxu0 0.0
    %195 = vmatpush2.msra.mxu0 0.0
    %196 = vmatprep.subr.mxu0 0.0
    %197 = vmatpush2.msra.mxu0 0.0
    %198 = vmatprep.subr.mxu0 0.0
    %199 = vmatpush2.msra.mxu0 0.0
    %200 = vmatprep.subr.mxu0 0.0
    %201 = vmatpush2.msra.mxu0 0.0
    %202 = vmatprep.subr.mxu0 0.0
    %203 = vmatpush2.msra.mxu0 0.0
    %204 = vmatprep.subr.mxu0 0.0
    %205 = vmatpush2.msra.mxu0 0.0
    %206 = vmatprep.subr.mxu0 0.0
    %207 = vmatpush2.msra.mxu0 0.0
    %208 = vmatprep.mubr.f32.mxu0 0.0
    %209 = vmatmul.mubr.f32.gmra.mxu0 %v122
    %v210 = vpop.f32.mrf.mxu0
    %v211 = vadd.f32 0.0, %v210
    %v212 = vpop.f32.mrf.mxu0
    %213 = vmatprep.mubr.f32.mxu0 0.0
    %214 = vmatmul.mubr.f32.gmra.mxu0 %v123
    %v215 = vpop.f32.mrf.mxu0
    %v216 = vadd.f32 0.0, %v215
    %v217 = vpop.f32.mrf.mxu0
    %218 = vmatprep.mubr.f32.mxu0 0.0
    %219 = vmatmul.mubr.f32.gmra.mxu0 %v124
    %v220 = vpop.f32.mrf.mxu0
    %v221 = vadd.f32 0.0, %v220
    %v222 = vpop.f32.mrf.mxu0
    %223 = vmatprep.mubr.f32.mxu0 0.0
    %224 = vmatmul.mubr.f32.gmra.mxu0 %v125
    %v225 = vpop.f32.mrf.mxu0
    %v226 = vadd.f32 0.0, %v225
    %v227 = vpop.f32.mrf.mxu0
    %228 = vmatprep.mubr.f32.mxu0 0.0
    %229 = vmatmul.mubr.f32.gmra.mxu0 %v126
    %v230 = vpop.f32.mrf.mxu0
    %v231 = vadd.f32 0.0, %v230
    %v232 = vpop.f32.mrf.mxu0
    %233 = vmatprep.mubr.f32.mxu0 0.0
    %234 = vmatmul.mubr.f32.gmra.mxu0 %v127
    %v235 = vpop.f32.mrf.mxu0
    %v236 = vadd.f32 0.0, %v235
    %v237 = vpop.f32.mrf.mxu0
    %238 = vdwg.mxu0
    %v239 = vld [vmem:[#allocation4] sm:$0xff]
    %v240 = vld [vmem:[#allocation4 + $0x8] sm:$0xff]
    %v241 = vld [vmem:[#allocation4 + $0x10] sm:$0xff]
    %v242 = vld [vmem:[#allocation4 + $0x18] sm:$0xff]
    %v243 = vld [vmem:[#allocation4 + $0x20] sm:$0xff]
    %v244 = vld [vmem:[#allocation4 + $0x28] sm:$0xff]
    %v245 = vld [vmem:[#allocation4 + $0x30] sm:$0xff]
    %v246 = vld [vmem:[#allocation4 + $0x38] sm:$0xff]
    %v247 = vld [vmem:[#allocation4 + $0x40] sm:$0xff]
    %v248 = vld [vmem:[#allocation4 + $0x48] sm:$0xff]
    %v249 = vld [vmem:[#allocation4 + $0x50] sm:$0xff]
    %v250 = vld [vmem:[#allocation4 + $0x58] sm:$0xff]
    %v251 = vld [vmem:[#allocation4 + $0x60] sm:$0xff]
    %v252 = vld [vmem:[#allocation4 + $0x68] sm:$0xff]
    %v253 = vld [vmem:[#allocation4 + $0x70] sm:$0xff]
    %v254 = vld [vmem:[#allocation4 + $0x78] sm:$0xff]
    %v255 = vld [vmem:[%s3] sm:$0x1]
    %v257 = vlaneseq
    %v258 = vshrl.u32 %v257, 7
    %v259 = vsub.s32 0, %v258
    %v260 = vrot.slane %v255, %v259
    %262 = vmatprep.subr.mxu0 0.0
    %263 = vmatpush1.msra.mxu0 %v254
    %264 = vmatprep.subr.mxu0 0.0
    %265 = vmatpush1.msra.mxu0 %v253
    %266 = vmatprep.subr.mxu0 0.0
    %267 = vmatpush1.msra.mxu0 %v252
    %268 = vmatprep.subr.mxu0 0.0
    %269 = vmatpush1.msra.mxu0 %v251
    %270 = vmatprep.subr.mxu0 0.0
    %271 = vmatpush1.msra.mxu0 %v250
    %272 = vmatprep.subr.mxu0 0.0
    %273 = vmatpush1.msra.mxu0 %v249
    %274 = vmatprep.subr.mxu0 0.0
    %275 = vmatpush1.msra.mxu0 %v248
    %276 = vmatprep.subr.mxu0 0.0
    %277 = vmatpush1.msra.mxu0 %v247
    %278 = vmatprep.subr.mxu0 0.0
    %279 = vmatpush1.msra.mxu0 %v246
    %280 = vmatprep.subr.mxu0 0.0
    %281 = vmatpush1.msra.mxu0 %v245
    %282 = vmatprep.subr.mxu0 0.0
    %283 = vmatpush1.msra.mxu0 %v244
    %284 = vmatprep.subr.mxu0 0.0
    %285 = vmatpush1.msra.mxu0 %v243
    %286 = vmatprep.subr.mxu0 0.0
    %287 = vmatpush1.msra.mxu0 %v242
    %288 = vmatprep.subr.mxu0 0.0
    %289 = vmatpush1.msra.mxu0 %v241
    %290 = vmatprep.subr.mxu0 0.0
    %291 = vmatpush1.msra.mxu0 %v240
    %292 = vmatprep.subr.mxu0 0.0
    %293 = vmatpush1.msra.mxu0 %v239
    %294 = vmatprep.subr.mxu0 0.0
    %295 = vmatpush2.msra.mxu0 0.0
    %296 = vmatprep.subr.mxu0 0.0
    %297 = vmatpush2.msra.mxu0 0.0
    %298 = vmatprep.subr.mxu0 0.0
    %299 = vmatpush2.msra.mxu0 0.0
    %300 = vmatprep.subr.mxu0 0.0
    %301 = vmatpush2.msra.mxu0 0.0
    %302 = vmatprep.subr.mxu0 0.0
    %303 = vmatpush2.msra.mxu0 0.0
    %304 = vmatprep.subr.mxu0 0.0
    %305 = vmatpush2.msra.mxu0 0.0
    %306 = vmatprep.subr.mxu0 0.0
    %307 = vmatpush2.msra.mxu0 0.0
    %308 = vmatprep.subr.mxu0 0.0
    %309 = vmatpush2.msra.mxu0 0.0
    %310 = vmatprep.subr.mxu0 0.0
    %311 = vmatpush2.msra.mxu0 0.0
    %312 = vmatprep.subr.mxu0 0.0
    %313 = vmatpush2.msra.mxu0 0.0
    %314 = vmatprep.subr.mxu0 0.0
    %315 = vmatpush2.msra.mxu0 0.0
    %316 = vmatprep.subr.mxu0 0.0
    %317 = vmatpush2.msra.mxu0 0.0
    %318 = vmatprep.subr.mxu0 0.0
    %319 = vmatpush2.msra.mxu0 0.0
    %320 = vmatprep.subr.mxu0 0.0
    %321 = vmatpush2.msra.mxu0 0.0
    %322 = vmatprep.subr.mxu0 0.0
    %323 = vmatpush2.msra.mxu0 0.0
    %324 = vmatprep.subr.mxu0 0.0
    %325 = vmatpush2.msra.mxu0 0.0
    %326 = vmatprep.mubr.f32.mxu0 0.0
    %327 = vmatmul.mubr.f32.gmra.mxu0 %v211
    %v328 = vpop.f32.mrf.mxu0
    %v329 = vadd.f32 %v260, %v328
    %v330 = vpop.f32.mrf.mxu0
    %331 = vmatprep.mubr.f32.mxu0 0.0
    %332 = vmatmul.mubr.f32.gmra.mxu0 %v216
    %v333 = vpop.f32.mrf.mxu0
    %v334 = vadd.f32 %v260, %v333
    %v335 = vpop.f32.mrf.mxu0
    %336 = vmatprep.mubr.f32.mxu0 0.0
    %337 = vmatmul.mubr.f32.gmra.mxu0 %v221
    %v338 = vpop.f32.mrf.mxu0
    %v339 = vadd.f32 %v260, %v338
    %v340 = vpop.f32.mrf.mxu0
    %341 = vmatprep.mubr.f32.mxu0 0.0
    %342 = vmatmul.mubr.f32.gmra.mxu0 %v226
    %v343 = vpop.f32.mrf.mxu0
    %v344 = vadd.f32 %v260, %v343
    %v345 = vpop.f32.mrf.mxu0
    %346 = vmatprep.mubr.f32.mxu0 0.0
    %347 = vmatmul.mubr.f32.gmra.mxu0 %v231
    %v348 = vpop.f32.mrf.mxu0
    %v349 = vadd.f32 %v260, %v348
    %v350 = vpop.f32.mrf.mxu0
    %351 = vmatprep.mubr.f32.mxu0 0.0
    %352 = vmatmul.mubr.f32.gmra.mxu0 %v236
    %v353 = vpop.f32.mrf.mxu0
    %v354 = vadd.f32 %v260, %v353
    %v355 = vpop.f32.mrf.mxu0
    %356 = vdwg.mxu0
    %v357 = vtanh.pop %v329
    %v358 = vtanh.pop %v334
    %v359 = vtanh.pop %v339
    %v360 = vtanh.pop %v344
    %v361 = vtanh.pop %v349
    %v362 = vtanh.pop %v354
    %v363 = vld [vmem:[#allocation6] sm:$0xff]
    %v364 = vld [vmem:[#allocation6 + $0x8] sm:$0xff]
    %v365 = vld [vmem:[#allocation6 + $0x10] sm:$0xff]
    %v366 = vld [vmem:[#allocation6 + $0x18] sm:$0xff]
    %v367 = vld [vmem:[#allocation6 + $0x20] sm:$0xff]
    %v368 = vld [vmem:[#allocation6 + $0x28] sm:$0xff]
    %v369 = vld [vmem:[#allocation6 + $0x30] sm:$0xff]
    %v370 = vld [vmem:[#allocation6 + $0x38] sm:$0xff]
    %v371 = vld [vmem:[#allocation6 + $0x40] sm:$0xff]
    %v372 = vld [vmem:[#allocation6 + $0x48] sm:$0xff]
    %v373 = vld [vmem:[#allocation6 + $0x50] sm:$0xff]
    %v374 = vld [vmem:[#allocation6 + $0x58] sm:$0xff]
    %v375 = vld [vmem:[#allocation6 + $0x60] sm:$0xff]
    %v376 = vld [vmem:[#allocation6 + $0x68] sm:$0xff]
    %v377 = vld [vmem:[#allocation6 + $0x70] sm:$0xff]
    %v378 = vld [vmem:[#allocation6 + $0x78] sm:$0xff]
    %v379 = vld [vmem:[#allocation6 + $0x80] sm:$0xff]
    %v380 = vld [vmem:[#allocation6 + $0x88] sm:$0xff]
    %v381 = vld [vmem:[#allocation6 + $0x90] sm:$0xff]
    %v382 = vld [vmem:[#allocation6 + $0x98] sm:$0xff]
    %v383 = vld [vmem:[#allocation6 + $0xa0] sm:$0xff]
    %v384 = vld [vmem:[#allocation6 + $0xa8] sm:$0xff]
    %v385 = vld [vmem:[#allocation6 + $0xb0] sm:$0xff]
    %v386 = vld [vmem:[#allocation6 + $0xb8] sm:$0xff]
    %v387 = vld [vmem:[#allocation6 + $0xc0] sm:$0xff]
    %v388 = vld [vmem:[#allocation6 + $0xc8] sm:$0xff]
    %v389 = vld [vmem:[#allocation6 + $0xd0] sm:$0xff]
    %v390 = vld [vmem:[#allocation6 + $0xd8] sm:$0xff]
    %v391 = vld [vmem:[#allocation6 + $0xe0] sm:$0xff]
    %v392 = vld [vmem:[#allocation6 + $0xe8] sm:$0xff]
    %v393 = vld [vmem:[#allocation6 + $0xf0] sm:$0xff]
    %v394 = vld [vmem:[#allocation6 + $0xf8] sm:$0xff]
    %v395 = vld [vmem:[#allocation6 + $0x100] sm:$0xff]
    %v396 = vld [vmem:[#allocation6 + $0x108] sm:$0xff]
    %v397 = vld [vmem:[#allocation6 + $0x110] sm:$0xff]
    %v398 = vld [vmem:[#allocation6 + $0x118] sm:$0xff]
    %v399 = vld [vmem:[#allocation6 + $0x120] sm:$0xff]
    %v400 = vld [vmem:[#allocation6 + $0x128] sm:$0xff]
    %v401 = vld [vmem:[#allocation6 + $0x130] sm:$0xff]
    %v402 = vld [vmem:[#allocation6 + $0x138] sm:$0xff]
    %v403 = vld [vmem:[#allocation6 + $0x140] sm:$0xff]
    %v404 = vld [vmem:[#allocation6 + $0x148] sm:$0xff]
    %v405 = vld [vmem:[#allocation6 + $0x150] sm:$0xff]
    %v406 = vld [vmem:[#allocation6 + $0x158] sm:$0xff]
    %v407 = vld [vmem:[#allocation6 + $0x160] sm:$0xff]
    %v408 = vld [vmem:[#allocation6 + $0x168] sm:$0xff]
    %v409 = vld [vmem:[#allocation6 + $0x170] sm:$0xff]
    %v410 = vld [vmem:[#allocation6 + $0x178] sm:$0xff]
    %v411 = vld [vmem:[%s5] sm:$0x7]
    %v413 = vlaneseq
    %v414 = vshrl.u32 %v413, 7
    %v415 = vsub.s32 0, %v414
    %v416 = vrot.slane %v411, %v415
    %v417 = vlaneseq
    %v418 = vshrl.u32 %v417, 7
    %v419 = vsub.s32 1, %v418
    %v420 = vrot.slane %v411, %v419
    %v421 = vlaneseq
    %v422 = vshrl.u32 %v421, 7
    %v423 = vsub.s32 2, %v422
    %v424 = vrot.slane %v411, %v423
    %428 = vmatprep.subr.mxu0 %v409
    %429 = vmatpush1.msra.mxu0 %v408
    %430 = vmatprep.subr.mxu0 %v406
    %431 = vmatpush1.msra.mxu0 %v405
    %432 = vmatprep.subr.mxu0 %v403
    %433 = vmatpush1.msra.mxu0 %v402
    %434 = vmatprep.subr.mxu0 %v400
    %435 = vmatpush1.msra.mxu0 %v399
    %436 = vmatprep.subr.mxu0 %v397
    %437 = vmatpush1.msra.mxu0 %v396
    %438 = vmatprep.subr.mxu0 %v394
    %439 = vmatpush1.msra.mxu0 %v393
    %440 = vmatprep.subr.mxu0 %v391
    %441 = vmatpush1.msra.mxu0 %v390
    %442 = vmatprep.subr.mxu0 %v388
    %443 = vmatpush1.msra.mxu0 %v387
    %444 = vmatprep.subr.mxu0 %v385
    %445 = vmatpush1.msra.mxu0 %v384
    %446 = vmatprep.subr.mxu0 %v382
    %447 = vmatpush1.msra.mxu0 %v381
    %448 = vmatprep.subr.mxu0 %v379
    %449 = vmatpush1.msra.mxu0 %v378
    %450 = vmatprep.subr.mxu0 %v376
    %451 = vmatpush1.msra.mxu0 %v375
    %452 = vmatprep.subr.mxu0 %v373
    %453 = vmatpush1.msra.mxu0 %v372
    %454 = vmatprep.subr.mxu0 %v370
    %455 = vmatpush1.msra.mxu0 %v369
    %456 = vmatprep.subr.mxu0 %v367
    %457 = vmatpush1.msra.mxu0 %v366
    %458 = vmatprep.subr.mxu0 %v364
    %459 = vmatpush1.msra.mxu0 %v363
    %460 = vmatprep.subr.mxu0 0.0
    %461 = vmatpush2.msra.mxu0 0.0
    %462 = vmatprep.subr.mxu0 0.0
    %463 = vmatpush2.msra.mxu0 0.0
    %464 = vmatprep.subr.mxu0 0.0
    %465 = vmatpush2.msra.mxu0 0.0
    %466 = vmatprep.subr.mxu0 0.0
    %467 = vmatpush2.msra.mxu0 0.0
    %468 = vmatprep.subr.mxu0 0.0
    %469 = vmatpush2.msra.mxu0 0.0
    %470 = vmatprep.subr.mxu0 0.0
    %471 = vmatpush2.msra.mxu0 0.0
    %472 = vmatprep.subr.mxu0 0.0
    %473 = vmatpush2.msra.mxu0 0.0
    %474 = vmatprep.subr.mxu0 0.0
    %475 = vmatpush2.msra.mxu0 0.0
    %476 = vmatprep.subr.mxu0 0.0
    %477 = vmatpush2.msra.mxu0 0.0
    %478 = vmatprep.subr.mxu0 0.0
    %479 = vmatpush2.msra.mxu0 0.0
    %480 = vmatprep.subr.mxu0 0.0
    %481 = vmatpush2.msra.mxu0 0.0
    %482 = vmatprep.subr.mxu0 0.0
    %483 = vmatpush2.msra.mxu0 0.0
    %484 = vmatprep.subr.mxu0 0.0
    %485 = vmatpush2.msra.mxu0 0.0
    %486 = vmatprep.subr.mxu0 0.0
    %487 = vmatpush2.msra.mxu0 0.0
    %488 = vmatprep.subr.mxu0 0.0
    %489 = vmatpush2.msra.mxu0 0.0
    %490 = vmatprep.subr.mxu0 0.0
    %491 = vmatpush2.msra.mxu0 0.0
    %492 = vmatprep.mubr.f32.mxu0 0.0
    %493 = vmatmul.mubr.f32.gmra.mxu0 %v357
    %v494 = vpop.f32.mrf.mxu0
    %v495 = vpop.f32.mrf.mxu0
    %v496 = vadd.f32 %v420, %v495
    %497 = vmatprep.mubr.f32.mxu0 0.0
    %498 = vmatmul.mubr.f32.gmra.mxu0 %v358
    %v499 = vpop.f32.mrf.mxu0
    %v500 = vpop.f32.mrf.mxu0
    %v501 = vadd.f32 %v420, %v500
    %502 = vmatprep.mubr.f32.mxu0 0.0
    %503 = vmatmul.mubr.f32.gmra.mxu0 %v359
    %v504 = vpop.f32.mrf.mxu0
    %v505 = vpop.f32.mrf.mxu0
    %v506 = vadd.f32 %v420, %v505
    %507 = vmatprep.mubr.f32.mxu0 0.0
    %508 = vmatmul.mubr.f32.gmra.mxu0 %v360
    %v509 = vpop.f32.mrf.mxu0
    %v510 = vpop.f32.mrf.mxu0
    %v511 = vadd.f32 %v420, %v510
    %512 = vmatprep.mubr.f32.mxu0 0.0
    %513 = vmatmul.mubr.f32.gmra.mxu0 %v361
    %v514 = vpop.f32.mrf.mxu0
    %v515 = vadd.f32 %v416, %v514
    %v516 = vpop.f32.mrf.mxu0
    %517 = vmatprep.mubr.f32.mxu0 0.0
    %518 = vmatmul.mubr.f32.gmra.mxu0 %v362
    %v519 = vpop.f32.mrf.mxu0
    %v520 = vadd.f32 %v416, %v519
    %v521 = vpop.f32.mrf.mxu0
    %522 = vdwg.mxu0
    %523 = vmatprep.subr.mxu0 0.0
    %524 = vmatpush1.msra.mxu0 %v410
    %525 = vmatprep.subr.mxu0 0.0
    %526 = vmatpush1.msra.mxu0 %v407
    %527 = vmatprep.subr.mxu0 0.0
    %528 = vmatpush1.msra.mxu0 %v404
    %529 = vmatprep.subr.mxu0 0.0
    %530 = vmatpush1.msra.mxu0 %v401
    %531 = vmatprep.subr.mxu0 0.0
    %532 = vmatpush1.msra.mxu0 %v398
    %533 = vmatprep.subr.mxu0 0.0
    %534 = vmatpush1.msra.mxu0 %v395
    %535 = vmatprep.subr.mxu0 0.0
    %536 = vmatpush1.msra.mxu0 %v392
    %537 = vmatprep.subr.mxu0 0.0
    %538 = vmatpush1.msra.mxu0 %v389
    %539 = vmatprep.subr.mxu0 0.0
    %540 = vmatpush1.msra.mxu0 %v386
    %541 = vmatprep.subr.mxu0 0.0
    %542 = vmatpush1.msra.mxu0 %v383
    %543 = vmatprep.subr.mxu0 0.0
    %544 = vmatpush1.msra.mxu0 %v380
    %545 = vmatprep.subr.mxu0 0.0
    %546 = vmatpush1.msra.mxu0 %v377
    %547 = vmatprep.subr.mxu0 0.0
    %548 = vmatpush1.msra.mxu0 %v374
    %549 = vmatprep.subr.mxu0 0.0
    %550 = vmatpush1.msra.mxu0 %v371
    %551 = vmatprep.subr.mxu0 0.0
    %552 = vmatpush1.msra.mxu0 %v368
    %553 = vmatprep.subr.mxu0 0.0
    %554 = vmatpush1.msra.mxu0 %v365
    %555 = vmatprep.subr.mxu0 0.0
    %556 = vmatpush2.msra.mxu0 0.0
    %557 = vmatprep.subr.mxu0 0.0
    %558 = vmatpush2.msra.mxu0 0.0
    %559 = vmatprep.subr.mxu0 0.0
    %560 = vmatpush2.msra.mxu0 0.0
    %561 = vmatprep.subr.mxu0 0.0
    %562 = vmatpush2.msra.mxu0 0.0
    %563 = vmatprep.subr.mxu0 0.0
    %564 = vmatpush2.msra.mxu0 0.0
    %565 = vmatprep.subr.mxu0 0.0
    %566 = vmatpush2.msra.mxu0 0.0
    %567 = vmatprep.subr.mxu0 0.0
    %568 = vmatpush2.msra.mxu0 0.0
    %569 = vmatprep.subr.mxu0 0.0
    %570 = vmatpush2.msra.mxu0 0.0
    %571 = vmatprep.subr.mxu0 0.0
    %572 = vmatpush2.msra.mxu0 0.0
    %573 = vmatprep.subr.mxu0 0.0
    %574 = vmatpush2.msra.mxu0 0.0
    %575 = vmatprep.subr.mxu0 0.0
    %576 = vmatpush2.msra.mxu0 0.0
    %577 = vmatprep.subr.mxu0 0.0
    %578 = vmatpush2.msra.mxu0 0.0
    %579 = vmatprep.subr.mxu0 0.0
    %580 = vmatpush2.msra.mxu0 0.0
    %581 = vmatprep.subr.mxu0 0.0
    %582 = vmatpush2.msra.mxu0 0.0
    %583 = vmatprep.subr.mxu0 0.0
    %584 = vmatpush2.msra.mxu0 0.0
    %585 = vmatprep.subr.mxu0 0.0
    %586 = vmatpush2.msra.mxu0 0.0
    %587 = vmatprep.mubr.f32.mxu0 0.0
    %588 = vmatmul.mubr.f32.gmra.mxu0 %v357
    %v589 = vpop.f32.mrf.mxu0
    %v590 = vadd.f32 %v424, %v589
    %v591 = vpop.f32.mrf.mxu0
    %592 = vmatprep.mubr.f32.mxu0 0.0
    %593 = vmatmul.mubr.f32.gmra.mxu0 %v358
    %v594 = vpop.f32.mrf.mxu0
    %v595 = vadd.f32 %v424, %v594
    %v596 = vpop.f32.mrf.mxu0
    %597 = vmatprep.mubr.f32.mxu0 0.0
    %598 = vmatmul.mubr.f32.gmra.mxu0 %v359
    %v599 = vpop.f32.mrf.mxu0
    %v600 = vadd.f32 %v424, %v599
    %v601 = vpop.f32.mrf.mxu0
    %602 = vmatprep.mubr.f32.mxu0 0.0
    %603 = vmatmul.mubr.f32.gmra.mxu0 %v360
    %v604 = vpop.f32.mrf.mxu0
    %v605 = vadd.f32 %v424, %v604
    %v606 = vpop.f32.mrf.mxu0
    %607 = vmatprep.mubr.f32.mxu0 0.0
    %608 = vmatmul.mubr.f32.gmra.mxu0 %v361
    %v609 = vpop.f32.mrf.mxu0
    %v610 = vpop.f32.mrf.mxu0
    %611 = vmatprep.mubr.f32.mxu0 0.0
    %612 = vmatmul.mubr.f32.gmra.mxu0 %v362
    %v613 = vpop.f32.mrf.mxu0
    %v614 = vpop.f32.mrf.mxu0
    %615 = vdwg.mxu0
    %616 = vmatprep.subr.mxu0 0.0
    %617 = vmatpush1.xpose.msra.mxu0 0.0
    %618 = vmatprep.subr.mxu0 0.0
    %619 = vmatpush1.xpose.msra.mxu0 0.0
    %620 = vmatprep.subr.mxu0 0.0
    %621 = vmatpush1.xpose.msra.mxu0 0.0
    %622 = vmatprep.subr.mxu0 0.0
    %623 = vmatpush1.xpose.msra.mxu0 0.0
    %624 = vmatprep.subr.mxu0 0.0
    %625 = vmatpush1.xpose.msra.mxu0 0.0
    %626 = vmatprep.subr.mxu0 0.0
    %627 = vmatpush1.xpose.msra.mxu0 0.0
    %628 = vmatprep.subr.mxu0 0.0
    %629 = vmatpush1.xpose.msra.mxu0 0.0
    %630 = vmatprep.subr.mxu0 0.0
    %631 = vmatpush1.xpose.msra.mxu0 0.0
    %632 = vmatprep.subr.mxu0 0.0
    %633 = vmatpush1.xpose.msra.mxu0 0.0
    %634 = vmatprep.subr.mxu0 0.0
    %635 = vmatpush1.xpose.msra.mxu0 0.0
    %636 = vmatprep.subr.mxu0 0.0
    %637 = vmatpush1.xpose.msra.mxu0 0.0
    %638 = vmatprep.subr.mxu0 0.0
    %639 = vmatpush1.xpose.msra.mxu0 0.0
    %640 = vmatprep.subr.mxu0 0.0
    %641 = vmatpush1.xpose.msra.mxu0 0.0
    %642 = vmatprep.subr.mxu0 0.0
    %643 = vmatpush1.xpose.msra.mxu0 0.0
    %644 = vmatprep.subr.mxu0 0.0
    %645 = vmatpush1.xpose.msra.mxu0 %v501
    %646 = vmatprep.subr.mxu0 0.0
    %647 = vmatpush1.xpose.msra.mxu0 %v496
    %648 = vmatprep.subr.mxu0 0.0
    %649 = vmatpush2.xpose.msra.mxu0 0.0
    %650 = vmatprep.subr.mxu0 0.0
    %651 = vmatpush2.xpose.msra.mxu0 0.0
    %652 = vmatprep.subr.mxu0 0.0
    %653 = vmatpush2.xpose.msra.mxu0 0.0
    %654 = vmatprep.subr.mxu0 0.0
    %655 = vmatpush2.xpose.msra.mxu0 0.0
    %656 = vmatprep.subr.mxu0 0.0
    %657 = vmatpush2.xpose.msra.mxu0 0.0
    %658 = vmatprep.subr.mxu0 0.0
    %659 = vmatpush2.xpose.msra.mxu0 0.0
    %660 = vmatprep.subr.mxu0 0.0
    %661 = vmatpush2.xpose.msra.mxu0 0.0
    %662 = vmatprep.subr.mxu0 0.0
    %663 = vmatpush2.xpose.msra.mxu0 0.0
    %664 = vmatprep.subr.mxu0 0.0
    %665 = vmatpush2.xpose.msra.mxu0 0.0
    %666 = vmatprep.subr.mxu0 0.0
    %667 = vmatpush2.xpose.msra.mxu0 0.0
    %668 = vmatprep.subr.mxu0 0.0
    %669 = vmatpush2.xpose.msra.mxu0 0.0
    %670 = vmatprep.subr.mxu0 0.0
    %671 = vmatpush2.xpose.msra.mxu0 0.0
    %672 = vmatprep.subr.mxu0 0.0
    %673 = vmatpush2.xpose.msra.mxu0 0.0
    %674 = vmatprep.subr.mxu0 0.0
    %675 = vmatpush2.xpose.msra.mxu0 0.0
    %676 = vmatprep.subr.mxu0 0.0
    %677 = vmatpush2.xpose.msra.mxu0 0.0
    %678 = vmatprep.subr.mxu0 0.0
    %679 = vmatpush2.xpose.msra.mxu0 0.0
    %680 = vmatprep.mubr.f32.mxu0 0.0
    %681 = vmatmul.mubr.f32.gmra.mxu0 %v515
    %v682 = vpop.f32.mrf.mxu0
    %v683 = vadd.f32 0.0, %v682
    %v684 = vpop.f32.mrf.mxu0
    %685 = vdwg.mxu0
    %v686 = vmul.f32 %v683, 0.088388346
    %vm687 = vcmask 130048
    %v688 = vsel %vm687, %v686, -inf
    %689 = vmax.xlane.f32.xlu0 %v688
    %v690 = vpop.xlane.xlu0 %689
    %v691 = vsub.f32 %v686, %v690
    %v692 = vmul.f32 %v691, 1.442695
    %v693 = vpow.pop %v692
    %v694 = vsel %vm687, %v693, 0.0
    %695 = vadd.xlane.f32.xlu0 %v694
    %v696 = vpop.xlane.xlu0 %695
    %v697 = vrcp.pop %v696
    %v698 = vmul.f32 %v693, %v697
    %v700 = vsel %vm687, %v698, 0
    %702 = vmatprep.subr.mxu0 0.0
    %703 = vmatpush1.msra.mxu0 0.0
    %704 = vmatprep.subr.mxu0 0.0
    %705 = vmatpush1.msra.mxu0 0.0
    %706 = vmatprep.subr.mxu0 0.0
    %707 = vmatpush1.msra.mxu0 0.0
    %708 = vmatprep.subr.mxu0 0.0
    %709 = vmatpush1.msra.mxu0 0.0
    %710 = vmatprep.subr.mxu0 0.0
    %711 = vmatpush1.msra.mxu0 0.0
    %712 = vmatprep.subr.mxu0 0.0
    %713 = vmatpush1.msra.mxu0 0.0
    %714 = vmatprep.subr.mxu0 0.0
    %715 = vmatpush1.msra.mxu0 0.0
    %716 = vmatprep.subr.mxu0 0.0
    %717 = vmatpush1.msra.mxu0 0.0
    %718 = vmatprep.subr.mxu0 0.0
    %719 = vmatpush1.msra.mxu0 0.0
    %720 = vmatprep.subr.mxu0 0.0
    %721 = vmatpush1.msra.mxu0 0.0
    %722 = vmatprep.subr.mxu0 0.0
    %723 = vmatpush1.msra.mxu0 0.0
    %724 = vmatprep.subr.mxu0 0.0
    %725 = vmatpush1.msra.mxu0 0.0
    %726 = vmatprep.subr.mxu0 0.0
    %727 = vmatpush1.msra.mxu0 0.0
    %728 = vmatprep.subr.mxu0 0.0
    %729 = vmatpush1.msra.mxu0 0.0
    %730 = vmatprep.subr.mxu0 0.0
    %731 = vmatpush1.msra.mxu0 %v595
    %732 = vmatprep.subr.mxu0 0.0
    %733 = vmatpush1.msra.mxu0 %v590
    %734 = vmatprep.subr.mxu0 0.0
    %735 = vmatpush2.msra.mxu0 0.0
    %736 = vmatprep.subr.mxu0 0.0
    %737 = vmatpush2.msra.mxu0 0.0
    %738 = vmatprep.subr.mxu0 0.0
    %739 = vmatpush2.msra.mxu0 0.0
    %740 = vmatprep.subr.mxu0 0.0
    %741 = vmatpush2.msra.mxu0 0.0
    %742 = vmatprep.subr.mxu0 0.0
    %743 = vmatpush2.msra.mxu0 0.0
    %744 = vmatprep.subr.mxu0 0.0
    %745 = vmatpush2.msra.mxu0 0.0
    %746 = vmatprep.subr.mxu0 0.0
    %747 = vmatpush2.msra.mxu0 0.0
    %748 = vmatprep.subr.mxu0 0.0
    %749 = vmatpush2.msra.mxu0 0.0
    %750 = vmatprep.subr.mxu0 0.0
    %751 = vmatpush2.msra.mxu0 0.0
    %752 = vmatprep.subr.mxu0 0.0
    %753 = vmatpush2.msra.mxu0 0.0
    %754 = vmatprep.subr.mxu0 0.0
    %755 = vmatpush2.msra.mxu0 0.0
    %756 = vmatprep.subr.mxu0 0.0
    %757 = vmatpush2.msra.mxu0 0.0
    %758 = vmatprep.subr.mxu0 0.0
    %759 = vmatpush2.msra.mxu0 0.0
    %760 = vmatprep.subr.mxu0 0.0
    %761 = vmatpush2.msra.mxu0 0.0
    %762 = vmatprep.subr.mxu0 0.0
    %763 = vmatpush2.msra.mxu0 0.0
    %764 = vmatprep.subr.mxu0 0.0
    %765 = vmatpush2.msra.mxu0 0.0
    %766 = vmatprep.mubr.f32.mxu0 0.0
    %767 = vmatmul.mubr.f32.gmra.mxu0 %v700
    %v768 = vpop.f32.mrf.mxu0
    %v769 = vadd.f32 0.0, %v768
    %v770 = vpop.f32.mrf.mxu0
    %771 = vdwg.mxu0
    %772 = vmatprep.subr.mxu0 0.0
    %773 = vmatpush1.xpose.msra.mxu0 0.0
    %774 = vmatprep.subr.mxu0 0.0
    %775 = vmatpush1.xpose.msra.mxu0 0.0
    %776 = vmatprep.subr.mxu0 0.0
    %777 = vmatpush1.xpose.msra.mxu0 0.0
    %778 = vmatprep.subr.mxu0 0.0
    %779 = vmatpush1.xpose.msra.mxu0 0.0
    %780 = vmatprep.subr.mxu0 0.0
    %781 = vmatpush1.xpose.msra.mxu0 0.0
    %782 = vmatprep.subr.mxu0 0.0
    %783 = vmatpush1.xpose.msra.mxu0 0.0
    %784 = vmatprep.subr.mxu0 0.0
    %785 = vmatpush1.xpose.msra.mxu0 0.0
    %786 = vmatprep.subr.mxu0 0.0
    %787 = vmatpush1.xpose.msra.mxu0 0.0
    %788 = vmatprep.subr.mxu0 0.0
    %789 = vmatpush1.xpose.msra.mxu0 0.0
    %790 = vmatprep.subr.mxu0 0.0
    %791 = vmatpush1.xpose.msra.mxu0 0.0
    %792 = vmatprep.subr.mxu0 0.0
    %793 = vmatpush1.xpose.msra.mxu0 0.0
    %794 = vmatprep.subr.mxu0 0.0
    %795 = vmatpush1.xpose.msra.mxu0 0.0
    %796 = vmatprep.subr.mxu0 0.0
    %797 = vmatpush1.xpose.msra.mxu0 0.0
    %798 = vmatprep.subr.mxu0 0.0
    %799 = vmatpush1.xpose.msra.mxu0 0.0
    %800 = vmatprep.subr.mxu0 0.0
    %801 = vmatpush1.xpose.msra.mxu0 %v511
    %802 = vmatprep.subr.mxu0 0.0
    %803 = vmatpush1.xpose.msra.mxu0 %v506
    %804 = vmatprep.subr.mxu0 0.0
    %805 = vmatpush2.xpose.msra.mxu0 0.0
    %806 = vmatprep.subr.mxu0 0.0
    %807 = vmatpush2.xpose.msra.mxu0 0.0
    %808 = vmatprep.subr.mxu0 0.0
    %809 = vmatpush2.xpose.msra.mxu0 0.0
    %810 = vmatprep.subr.mxu0 0.0
    %811 = vmatpush2.xpose.msra.mxu0 0.0
    %812 = vmatprep.subr.mxu0 0.0
    %813 = vmatpush2.xpose.msra.mxu0 0.0
    %814 = vmatprep.subr.mxu0 0.0
    %815 = vmatpush2.xpose.msra.mxu0 0.0
    %816 = vmatprep.subr.mxu0 0.0
    %817 = vmatpush2.xpose.msra.mxu0 0.0
    %818 = vmatprep.subr.mxu0 0.0
    %819 = vmatpush2.xpose.msra.mxu0 0.0
    %820 = vmatprep.subr.mxu0 0.0
    %821 = vmatpush2.xpose.msra.mxu0 0.0
    %822 = vmatprep.subr.mxu0 0.0
    %823 = vmatpush2.xpose.msra.mxu0 0.0
    %824 = vmatprep.subr.mxu0 0.0
    %825 = vmatpush2.xpose.msra.mxu0 0.0
    %826 = vmatprep.subr.mxu0 0.0
    %827 = vmatpush2.xpose.msra.mxu0 0.0
    %828 = vmatprep.subr.mxu0 0.0
    %829 = vmatpush2.xpose.msra.mxu0 0.0
    %830 = vmatprep.subr.mxu0 0.0
    %831 = vmatpush2.xpose.msra.mxu0 0.0
    %832 = vmatprep.subr.mxu0 0.0
    %833 = vmatpush2.xpose.msra.mxu0 0.0
    %834 = vmatprep.subr.mxu0 0.0
    %835 = vmatpush2.xpose.msra.mxu0 0.0
    %836 = vmatprep.mubr.f32.mxu0 0.0
    %837 = vmatmul.mubr.f32.gmra.mxu0 %v520
    %v838 = vpop.f32.mrf.mxu0
    %v839 = vadd.f32 0.0, %v838
    %v840 = vpop.f32.mrf.mxu0
    %841 = vdwg.mxu0
    %v842 = vmul.f32 %v839, 0.088388346
    %v843 = vsel %vm687, %v842, -inf
    %844 = vmax.xlane.f32.xlu0 %v843
    %v845 = vpop.xlane.xlu0 %844
    %v846 = vsub.f32 %v842, %v845
    %v847 = vmul.f32 %v846, 1.442695
    %v848 = vpow.pop %v847
    %v849 = vsel %vm687, %v848, 0.0
    %850 = vadd.xlane.f32.xlu0 %v849
    %v851 = vpop.xlane.xlu0 %850
    %v852 = vrcp.pop %v851
    %v853 = vmul.f32 %v848, %v852
    %v855 = vsel %vm687, %v853, 0
    %857 = vmatprep.subr.mxu0 0.0
    %858 = vmatpush1.msra.mxu0 0.0
    %859 = vmatprep.subr.mxu0 0.0
    %860 = vmatpush1.msra.mxu0 0.0
    %861 = vmatprep.subr.mxu0 0.0
    %862 = vmatpush1.msra.mxu0 0.0
    %863 = vmatprep.subr.mxu0 0.0
    %864 = vmatpush1.msra.mxu0 0.0
    %865 = vmatprep.subr.mxu0 0.0
    %866 = vmatpush1.msra.mxu0 0.0
    %867 = vmatprep.subr.mxu0 0.0
    %868 = vmatpush1.msra.mxu0 0.0
    %869 = vmatprep.subr.mxu0 0.0
    %870 = vmatpush1.msra.mxu0 0.0
    %871 = vmatprep.subr.mxu0 0.0
    %872 = vmatpush1.msra.mxu0 0.0
    %873 = vmatprep.subr.mxu0 0.0
    %874 = vmatpush1.msra.mxu0 0.0
    %875 = vmatprep.subr.mxu0 0.0
    %876 = vmatpush1.msra.mxu0 0.0
    %877 = vmatprep.subr.mxu0 0.0
    %878 = vmatpush1.msra.mxu0 0.0
    %879 = vmatprep.subr.mxu0 0.0
    %880 = vmatpush1.msra.mxu0 0.0
    %881 = vmatprep.subr.mxu0 0.0
    %882 = vmatpush1.msra.mxu0 0.0
    %883 = vmatprep.subr.mxu0 0.0
    %884 = vmatpush1.msra.mxu0 0.0
    %885 = vmatprep.subr.mxu0 0.0
    %886 = vmatpush1.msra.mxu0 %v605
    %887 = vmatprep.subr.mxu0 0.0
    %888 = vmatpush1.msra.mxu0 %v600
    %889 = vmatprep.subr.mxu0 0.0
    %890 = vmatpush2.msra.mxu0 0.0
    %891 = vmatprep.subr.mxu0 0.0
    %892 = vmatpush2.msra.mxu0 0.0
    %893 = vmatprep.subr.mxu0 0.0
    %894 = vmatpush2.msra.mxu0 0.0
    %895 = vmatprep.subr.mxu0 0.0
    %896 = vmatpush2.msra.mxu0 0.0
    %897 = vmatprep.subr.mxu0 0.0
    %898 = vmatpush2.msra.mxu0 0.0
    %899 = vmatprep.subr.mxu0 0.0
    %900 = vmatpush2.msra.mxu0 0.0
    %901 = vmatprep.subr.mxu0 0.0
    %902 = vmatpush2.msra.mxu0 0.0
    %903 = vmatprep.subr.mxu0 0.0
    %904 = vmatpush2.msra.mxu0 0.0
    %905 = vmatprep.subr.mxu0 0.0
    %906 = vmatpush2.msra.mxu0 0.0
    %907 = vmatprep.subr.mxu0 0.0
    %908 = vmatpush2.msra.mxu0 0.0
    %909 = vmatprep.subr.mxu0 0.0
    %910 = vmatpush2.msra.mxu0 0.0
    %911 = vmatprep.subr.mxu0 0.0
    %912 = vmatpush2.msra.mxu0 0.0
    %913 = vmatprep.subr.mxu0 0.0
    %914 = vmatpush2.msra.mxu0 0.0
    %915 = vmatprep.subr.mxu0 0.0
    %916 = vmatpush2.msra.mxu0 0.0
    %917 = vmatprep.subr.mxu0 0.0
    %918 = vmatpush2.msra.mxu0 0.0
    %919 = vmatprep.subr.mxu0 0.0
    %920 = vmatpush2.msra.mxu0 0.0
    %921 = vmatprep.mubr.f32.mxu0 0.0
    %922 = vmatmul.mubr.f32.gmra.mxu0 %v855
    %v923 = vpop.f32.mrf.mxu0
    %v924 = vadd.f32 0.0, %v923
    %v925 = vpop.f32.mrf.mxu0
    %926 = vdwg.mxu0
    %v927 = vld [vmem:[#allocation7] sm:$0xff]
    %v928 = vld [vmem:[#allocation7 + $0x8] sm:$0xff]
    %v929 = vld [vmem:[#allocation7 + $0x10] sm:$0xff]
    %v930 = vld [vmem:[#allocation7 + $0x18] sm:$0xff]
    %v931 = vld [vmem:[#allocation7 + $0x20] sm:$0xff]
    %v932 = vld [vmem:[#allocation7 + $0x28] sm:$0xff]
    %v933 = vld [vmem:[#allocation7 + $0x30] sm:$0xff]
    %v934 = vld [vmem:[#allocation7 + $0x38] sm:$0xff]
    %v935 = vld [vmem:[#allocation7 + $0x40] sm:$0xff]
    %v936 = vld [vmem:[#allocation7 + $0x48] sm:$0xff]
    %v937 = vld [vmem:[#allocation7 + $0x50] sm:$0xff]
    %v938 = vld [vmem:[#allocation7 + $0x58] sm:$0xff]
    %v939 = vld [vmem:[#allocation7 + $0x60] sm:$0xff]
    %v940 = vld [vmem:[#allocation7 + $0x68] sm:$0xff]
    %v941 = vld [vmem:[#allocation7 + $0x70] sm:$0xff]
    %v942 = vld [vmem:[#allocation7 + $0x78] sm:$0xff]
    %v943 = vld [vmem:[%s7] sm:$0x1]
    %v945 = vlaneseq
    %v946 = vshrl.u32 %v945, 7
    %v947 = vsub.s32 0, %v946
    %v948 = vrot.slane %v943, %v947
    %950 = vmatprep.subr.mxu0 0.0
    %951 = vmatpush1.msra.mxu0 %v942
    %952 = vmatprep.subr.mxu0 0.0
    %953 = vmatpush1.msra.mxu0 %v941
    %954 = vmatprep.subr.mxu0 0.0
    %955 = vmatpush1.msra.mxu0 %v940
    %956 = vmatprep.subr.mxu0 0.0
    %957 = vmatpush1.msra.mxu0 %v939
    %958 = vmatprep.subr.mxu0 0.0
    %959 = vmatpush1.msra.mxu0 %v938
    %960 = vmatprep.subr.mxu0 0.0
    %961 = vmatpush1.msra.mxu0 %v937
    %962 = vmatprep.subr.mxu0 0.0
    %963 = vmatpush1.msra.mxu0 %v936
    %964 = vmatprep.subr.mxu0 0.0
    %965 = vmatpush1.msra.mxu0 %v935
    %966 = vmatprep.subr.mxu0 0.0
    %967 = vmatpush1.msra.mxu0 %v934
    %968 = vmatprep.subr.mxu0 0.0
    %969 = vmatpush1.msra.mxu0 %v933
    %970 = vmatprep.subr.mxu0 0.0
    %971 = vmatpush1.msra.mxu0 %v932
    %972 = vmatprep.subr.mxu0 0.0
    %973 = vmatpush1.msra.mxu0 %v931
    %974 = vmatprep.subr.mxu0 0.0
    %975 = vmatpush1.msra.mxu0 %v930
    %976 = vmatprep.subr.mxu0 0.0
    %977 = vmatpush1.msra.mxu0 %v929
    %978 = vmatprep.subr.mxu0 0.0
    %979 = vmatpush1.msra.mxu0 %v928
    %980 = vmatprep.subr.mxu0 0.0
    %981 = vmatpush1.msra.mxu0 %v927
    %982 = vmatprep.subr.mxu0 0.0
    %983 = vmatpush2.msra.mxu0 0.0
    %984 = vmatprep.subr.mxu0 0.0
    %985 = vmatpush2.msra.mxu0 0.0
    %986 = vmatprep.subr.mxu0 0.0
    %987 = vmatpush2.msra.mxu0 0.0
    %988 = vmatprep.subr.mxu0 0.0
    %989 = vmatpush2.msra.mxu0 0.0
    %990 = vmatprep.subr.mxu0 0.0
    %991 = vmatpush2.msra.mxu0 0.0
    %992 = vmatprep.subr.mxu0 0.0
    %993 = vmatpush2.msra.mxu0 0.0
    %994 = vmatprep.subr.mxu0 0.0
    %995 = vmatpush2.msra.mxu0 0.0
    %996 = vmatprep.subr.mxu0 0.0
    %997 = vmatpush2.msra.mxu0 0.0
    %998 = vmatprep.subr.mxu0 0.0
    %999 = vmatpush2.msra.mxu0 0.0
    %1000 = vmatprep.subr.mxu0 0.0
    %1001 = vmatpush2.msra.mxu0 0.0
    %1002 = vmatprep.subr.mxu0 0.0
    %1003 = vmatpush2.msra.mxu0 0.0
    %1004 = vmatprep.subr.mxu0 0.0
    %1005 = vmatpush2.msra.mxu0 0.0
    %1006 = vmatprep.subr.mxu0 0.0
    %1007 = vmatpush2.msra.mxu0 0.0
    %1008 = vmatprep.subr.mxu0 0.0
    %1009 = vmatpush2.msra.mxu0 0.0
    %1010 = vmatprep.subr.mxu0 0.0
    %1011 = vmatpush2.msra.mxu0 0.0
    %1012 = vmatprep.subr.mxu0 0.0
    %1013 = vmatpush2.msra.mxu0 0.0
    %1014 = vmatprep.mubr.f32.mxu0 0.0
    %1015 = vmatmul.mubr.f32.gmra.mxu0 %v769
    %v1016 = vpop.f32.mrf.mxu0
    %v1017 = vadd.f32 %v948, %v1016
    %v1018 = vpop.f32.mrf.mxu0
    %1019 = vmatprep.mubr.f32.mxu0 0.0
    %1020 = vmatmul.mubr.f32.gmra.mxu0 %v361
    %v1021 = vpop.f32.mrf.mxu0
    %v1022 = vadd.f32 %v948, %v1021
    %v1023 = vpop.f32.mrf.mxu0
    %1024 = vmatprep.mubr.f32.mxu0 0.0
    %1025 = vmatmul.mubr.f32.gmra.mxu0 %v924
    %v1026 = vpop.f32.mrf.mxu0
    %v1027 = vadd.f32 %v948, %v1026
    %v1028 = vpop.f32.mrf.mxu0
    %1029 = vmatprep.mubr.f32.mxu0 0.0
    %1030 = vmatmul.mubr.f32.gmra.mxu0 %v362
    %v1031 = vpop.f32.mrf.mxu0
    %v1032 = vadd.f32 %v948, %v1031
    %v1033 = vpop.f32.mrf.mxu0
    %1034 = vdwg.mxu0
    %1035 = vst [vmem:[%s8] sm:$0xff] %v1017
    %1036 = vst [vmem:[%s8 + $0x8] sm:$0xff] %v1022
    %1037 = vst [vmem:[%s8 + $0x10] sm:$0xff] %v1027
    %1038 = vst [vmem:[%s8 + $0x18] sm:$0xff] %v1032
    // Predicated region
    $region50: #{ore_forward.1} parent=1 // pred_check
      _
    $region51: #{ore_forward.1} parent=1 // pred_check_branch
      %1040 = sbr.rel (0) target = $region53
    $region52: #{ore_forward.1} parent=1 // pred_region
      _
    $region53: #{ore_forward.1} parent=1 // pred_fallthru
      _
    // Predicated region
    $region54: #{ore_forward.1} parent=1 // pred_check
      _
    $region55: #{ore_forward.1} parent=1 // pred_check_branch
      %1042 = sbr.rel (0) target = $region57
    $region56: #{ore_forward.1} parent=1 // pred_region
      _
    $region57: #{ore_forward.1} parent=1 // pred_fallthru
      _
    %1043 = vsyncpa [#allocation3], 1
    %1044 = vsyncpa [#allocation5], 1
    %1045 = vsyncpa [#allocation8], 1

</llo_original>
